<compile_context>
chip_gen: v5e
topology: v5e:2x2
jax: 0.10.0
libtpu: 0.0.40
codegen_flags: <defaults>
</compile_context>

<pallas_src>
import math

import jax
import jax.numpy as jnp
from jax.experimental import pallas as pl
from jax.experimental.pallas import tpu as pltpu


# ----------------------------------------------------------------------------
# Pallas kernel: one (batch, N-tile) block of the 1x1 conv
# ----------------------------------------------------------------------------
def linear_embedding_kernel(w_ref, x_ref, o_ref):
    # w_ref: (C_out, C_in)        conv1x1 weight (kernel dim squeezed)
    # x_ref: (1, C_in, TILE_N)    channels on sublanes, points on lanes
    # o_ref: (1, C_out, TILE_N)   lane-dense output tile
    w = w_ref[...].astype(jnp.float32)
    x = x_ref[0].astype(jnp.float32)
    # 1x1 conv == channel matmul on the MXU; single full-block store per tile.
    o_ref[0] = jnp.dot(w, x, preferred_element_type=jnp.float32).astype(o_ref.dtype)


def _pick_tile_n(n):
    # Biggest lane-aligned tile that divides N; small N -> take the whole axis.
    for t in (512, 256, 128):
        if n % t == 0:
            return t
    return n


# ----------------------------------------------------------------------------
# Wrapper: LinearEmbedding forward
# ----------------------------------------------------------------------------
def linear_embedding(x, w, *, tile_n=None):
    """x: (B, C_in, N), w: (C_out, C_in)  ->  (B, C_out, N)"""
    B, Cin, N = x.shape
    Cout, Cin_w = w.shape
    assert Cin == Cin_w, (Cin, Cin_w)

    tn = _pick_tile_n(N) if tile_n is None else tile_n
    assert N % tn == 0, (N, tn)

    return pl.pallas_call(
        linear_embedding_kernel,
        out_shape=jax.ShapeDtypeStruct((B, Cout, N), x.dtype),
        grid=(B, N // tn),
        in_specs=[
            pl.BlockSpec((Cout, Cin), lambda b, j: (0, 0)),      # weights stay resident
            pl.BlockSpec((1, Cin, tn), lambda b, j: (b, 0, j)),  # x tile (lane axis = N)
        ],
        out_specs=pl.BlockSpec((1, Cout, tn), lambda b, j: (b, 0, j)),
        compiler_params=pltpu.CompilerParams(
            dimension_semantics=("parallel", "parallel")),
    )(w, x)


# ----------------------------------------------------------------------------
# Pure-JAX reference (direct transcription of the PyTorch forward)
# ----------------------------------------------------------------------------
def reference_forward(x, w):
    # nn.Conv1d(emb_in, emb_out, 1, bias=False): out[b,o,n] = sum_c W[o,c] x[b,c,n]
    return jnp.einsum('oc,bcn->bon', w, x)


if __name__ == "__main__":
    # Small shapes consistent with the module's usage in the shapenet model:
    # emb_in=3 (point coordinates), emb_out=64, B=2, N=16 points.
    B, Cin, N = 2, 3, 16
    Cout = 64

    key = jax.random.PRNGKey(0)
    kx, kw = jax.random.split(key, 2)

    x = jax.random.normal(kx, (B, Cin, N), dtype=jnp.float32)
    w = jax.random.normal(kw, (Cout, Cin), dtype=jnp.float32) / math.sqrt(Cin)

    out = linear_embedding(x, w)
    out = jax.block_until_ready(out)

    ref = reference_forward(x, w)
    ref = jax.block_until_ready(ref)

    assert out.shape == (B, Cout, N), out.shape
    assert jnp.allclose(out, ref, rtol=1e-5, atol=1e-5), \
        f"max abs err = {jnp.max(jnp.abs(out - ref))}"

    print("KERNEL_OK")
</pallas_src>

<mosaic_0001>
module attributes {stable_mosaic.version = 11 : i64} {
  func.func @linear_embedding_kernel(%arg0: i32, %arg1: i32, %arg2: memref<64x3xf32, #tpu.memory_space<vmem>>, %arg3: memref<1x3x16xf32, #tpu.memory_space<vmem>>, %arg4: memref<1x64x16xf32, #tpu.memory_space<vmem>>) attributes {dimension_semantics = [#tpu.dimension_semantics<parallel>, #tpu.dimension_semantics<parallel>], iteration_bounds = array<i64: 2, 1>, scalar_prefetch = 0 : i64, scratch_operands = 0 : i64, tpu.core_type = #tpu.core_type<tc>, window_params = [{pipeline_mode = #tpu.pipeline_mode<synchronous>, transform_indices = @transform_0, window_bounds = array<i64: 64, 3>}, {transform_indices = @transform_1, window_bounds = array<i64: 1, 3, 16>}, {transform_indices = @transform_2, window_bounds = array<i64: 1, 64, 16>}]} {
    %c0 = arith.constant 0 : index
    %c0_0 = arith.constant 0 : index
    %0 = vector.load %arg2[%c0, %c0_0] : memref<64x3xf32, #tpu.memory_space<vmem>>, vector<64x3xf32>
    %c0_1 = arith.constant 0 : index
    %c0_2 = arith.constant 0 : index
    %c0_3 = arith.constant 0 : index
    %1 = vector.load %arg3[%c0_1, %c0_2, %c0_3] : memref<1x3x16xf32, #tpu.memory_space<vmem>>, vector<1x3x16xf32>
    %2 = vector.shape_cast %1 : vector<1x3x16xf32> to vector<3x16xf32>
    %cst = arith.constant dense<0.000000e+00> : vector<64x16xf32>
    %3 = tpu.matmul %0, %2, %cst {dimension_numbers = #tpu.dot_dimension_numbers<[1], [0], [0], [1], [0, 0, 1, 1], [], []>} : vector<64x3xf32>, vector<3x16xf32>, vector<64x16xf32> -> vector<64x16xf32>
    %c0_4 = arith.constant 0 : index
    %c0_5 = arith.constant 0 : index
    %c0_6 = arith.constant 0 : index
    %4 = vector.load %arg4[%c0_4, %c0_5, %c0_6] : memref<1x64x16xf32, #tpu.memory_space<vmem>>, vector<1x64x16xf32>
    %5 = vector.shape_cast %4 : vector<1x64x16xf32> to vector<64x16xf32>
    %6 = vector.shape_cast %3 : vector<64x16xf32> to vector<1x64x16xf32>
    tpu.vector_store %arg4[%c0_4, %c0_5, %c0_6], %6 {strides = array<i32>} : memref<1x64x16xf32, #tpu.memory_space<vmem>>, vector<1x64x16xf32>,
    return
  }
  func.func @transform_0(%arg0: i32, %arg1: i32) -> (i32, i32) {
    %c0_i32 = arith.constant 0 : i32
    %c0_i32_0 = arith.constant 0 : i32
    %c0_i32_1 = arith.constant 0 : i32
    return %c0_i32, %c0_i32_0 : i32, i32
  }
  func.func @transform_1(%arg0: i32, %arg1: i32) -> (i32, i32, i32) {
    %c0_i32 = arith.constant 0 : i32
    %c0_i32_0 = arith.constant 0 : i32
    return %arg0, %c0_i32, %arg1 : i32, i32, i32
  }
  func.func @transform_2(%arg0: i32, %arg1: i32) -> (i32, i32, i32) {
    %c0_i32 = arith.constant 0 : i32
    %c0_i32_0 = arith.constant 0 : i32
    return %arg0, %c0_i32, %arg1 : i32, i32, i32
  }
}

</mosaic_0001>

<llo_original>
// kernel: tpu_custom_call.1
$region0: #{tpu_custom_call.1}
  #allocation0 [shape = 'u32[]', space=smem, size = 0x4, offset = 0x4, fixed_abs, tag = 'smem constant byte address 0x4 - core index']
  #allocation1 [shape = 'u32[72,128]{1,0:T(1,128)}', space=vmem, size = 0x9000, scoped, tag = 'internal scratch']
  %s0 = inlined_call_operand.vmem [shape: f32[64,3], index: 0, kind: input, shape index: {}]
  %s1 = inlined_call_operand.vmem [shape: f32[2,3,16], index: 1, kind: input, shape index: {}]
  %s2 = inlined_call_operand.vmem [shape: f32[2,64,16], index: 2, kind: output, shape index: {}]
  %s3 = sld [smem:[#allocation0]]
  $region41: #{tpu_custom_call.1} parent=0
    _
  %s5 = ssub.s32 1, %s3
  %s6 = scalar_select 0, %s5, %s3
  loop: start=0, step=1, limit=4
  $region2: #{tpu_custom_call.1} parent=0 // loop_pre_header
    _
  $region3: #{tpu_custom_call.1} parent=0 // loop_header
    %s8 = sphi 0, %s12
    %p9 = scmp.ge.s32.totalorder %s8, 4
    %s15 = sphi 0, %s27
    %s16 = sphi 0, %s23
    %s17 = sphi 0, %s15
    %s18 = sphi 0, %s16
    %s19 = sphi 0, %s17
    %s20 = sphi 0, %s18
    %s28 = sphi 0, %s28
    %s30 = sphi 0, %s28
    %s31 = sphi 0, %s30
    %s45 = sphi 0, %s31
    %s53 = sphi 0, %s55
    %s56 = sphi 0, %s53
    %s57 = sphi 0, %s56
    %s73 = sphi 0, %s57
    %s81 = sphi 0, %s83
    %s84 = sphi 0, %s81
    %s85 = sphi 0, %s84
    %s101 = sphi 0, %s85
  $region4: #{tpu_custom_call.1} parent=0 // loop_header_branch
    %11 = sbr.rel (%p9) target = $region8
  $region5: #{tpu_custom_call.1} parent=0 // loop_body
    %s13 = ssub.s32 %s8, 1
    %s14 = ssub.s32 %s8, 2
    %s21 = sadd.s32 1, %s16
    %p22 = scmp.ge.s32.totalorder %s21, 1
    %s23 = scalar_select %p22, 0, %s21
    %s24 = sadd.s32 1, %s15
    %s25 = scalar_select %p22, %s24, %s15
    %p26 = scmp.ge.s32.totalorder %s25, 2
    %s27 = scalar_select %p26, 0, %s25
    %s29 = sadd.s32 %s28, 1
    %p32 = scmp.eq.s32.totalorder %s8, 1
    %p33 = scmp.ne.s32.totalorder %s28, %s30
    %p34 = scmp.eq.s32.totalorder %s8, 0
    %p35 = por %p33, %p34
    %p36 = scmp.ne.s32.totalorder %s28, %s30
    %p37 = scmp.eq.s32.totalorder %s13, 1
    %p38 = por %p36, %p37
    %p39 = scmp.ne.s32.totalorder %s30, %s31
    %p40 = scmp.eq.s32.totalorder %s13, 0
    %p41 = por %p39, %p40
    %p42 = scmp.ne.s32.totalorder %s30, %s31
    %p43 = scmp.eq.s32.totalorder %s14, 1
    %p44 = por %p42, %p43
    %p46 = scmp.ne.s32.totalorder %s31, %s45
    %p47 = scmp.eq.s32.totalorder %s14, 0
    %p48 = por %p46, %p47
    %s49 = ssub.s32 %s15, %s27
    %s50 = ssub.s32 %s16, %s23
    %s51 = sor.u32 %s49, %s50
    %p52 = scmp.eq.s32.totalorder %s51, 0
    %s54 = sadd.s32 %s53, 1
    %s55 = scalar_select %p52, %s53, %s54
    %p58 = pneg %p52
    %p59 = scmp.eq.s32.totalorder %s8, 1
    %p60 = por %p58, %p59
    %p61 = scmp.ne.s32.totalorder %s53, %s56
    %p62 = scmp.eq.s32.totalorder %s8, 0
    %p63 = por %p61, %p62
    %p64 = scmp.ne.s32.totalorder %s53, %s56
    %p65 = scmp.eq.s32.totalorder %s13, 1
    %p66 = por %p64, %p65
    %p67 = scmp.ne.s32.totalorder %s56, %s57
    %p68 = scmp.eq.s32.totalorder %s13, 0
    %p69 = por %p67, %p68
    %p70 = scmp.ne.s32.totalorder %s56, %s57
    %p71 = scmp.eq.s32.totalorder %s14, 1
    %p72 = por %p70, %p71
    %p74 = scmp.ne.s32.totalorder %s57, %s73
    %p75 = scmp.eq.s32.totalorder %s14, 0
    %p76 = por %p74, %p75
    %s77 = ssub.s32 %s15, %s27
    %s78 = ssub.s32 %s16, %s23
    %s79 = sor.u32 %s77, %s78
    %p80 = scmp.eq.s32.totalorder %s79, 0
    %s82 = sadd.s32 %s81, 1
    %s83 = scalar_select %p80, %s81, %s82
    %p86 = pneg %p80
    %p87 = scmp.eq.s32.totalorder %s8, 1
    %p88 = por %p86, %p87
    %p89 = scmp.ne.s32.totalorder %s81, %s84
    %p90 = scmp.eq.s32.totalorder %s8, 0
    %p91 = por %p89, %p90
    %p92 = scmp.ne.s32.totalorder %s81, %s84
    %p93 = scmp.eq.s32.totalorder %s13, 1
    %p94 = por %p92, %p93
    %p95 = scmp.ne.s32.totalorder %s84, %s85
    %p96 = scmp.eq.s32.totalorder %s13, 0
    %p97 = por %p95, %p96
    %p98 = scmp.ne.s32.totalorder %s84, %s85
    %p99 = scmp.eq.s32.totalorder %s14, 1
    %p100 = por %p98, %p99
    %p102 = scmp.ne.s32.totalorder %s85, %s101
    %p103 = scmp.eq.s32.totalorder %s14, 0
    %p104 = por %p102, %p103
    %p105 = scmp.le.s32.totalorder 1, %s8
    %p106 = scmp.lt.s32.totalorder %s8, 3
    %p107 = pnand %p105, %p106
    %p108 = pneg %p107
    // Predicated region
    $region9: #{tpu_custom_call.1} parent=5 // pred_check
      _
    $region10: #{tpu_custom_call.1} parent=5 // pred_check_branch
      %110 = sbr.rel (%p107) target = $region12
    $region11: #{tpu_custom_call.1} parent=5 // pred_region
      %s111 = ssub.s32 %s8, 1
      // Predicated region
      $region13: #{tpu_custom_call.1} parent=11 // pred_check
        %p112 = pneg %p41
      $region14: #{tpu_custom_call.1} parent=11 // pred_check_branch
        %114 = sbr.rel (%p112) target = $region16
      $region15: #{tpu_custom_call.1} parent=11 // pred_region
        _
      $region16: #{tpu_custom_call.1} parent=11 // pred_fallthru
        _
    $region12: #{tpu_custom_call.1} parent=5 // pred_fallthru
      _
    %p115 = scmp.lt.s32.totalorder %s8, 2
    // Predicated region
    $region17: #{tpu_custom_call.1} parent=5 // pred_check
      %p116 = pneg %p115
    $region18: #{tpu_custom_call.1} parent=5 // pred_check_branch
      %118 = sbr.rel (%p116) target = $region20
    $region19: #{tpu_custom_call.1} parent=5 // pred_region
      // Predicated region
      $region21: #{tpu_custom_call.1} parent=19 // pred_check
        %p119 = pneg %p63
      $region22: #{tpu_custom_call.1} parent=19 // pred_check_branch
        %121 = sbr.rel (%p119) target = $region24
      $region23: #{tpu_custom_call.1} parent=19 // pred_region
        %p122 = scmp.lt.s32.totalorder %s15, 1
        %s123 = scalar_select %p122, %s15, 1
        %p124 = scmp.lt.s32.totalorder %s16, 0
        %s125 = scalar_select %p124, %s16, 0
        %s126 = sadd.s32 %s125, %s123
        %s127 = smul.addr %s126, 4
        %s128 = scalar_lea.vmem %s1, %s127
      $region24: #{tpu_custom_call.1} parent=19 // pred_fallthru
        _
    $region20: #{tpu_custom_call.1} parent=5 // pred_fallthru
      _
    %p129 = scmp.le.s32.totalorder 1, %s8
    %p130 = scmp.lt.s32.totalorder %s8, 3
    %p131 = pnand %p129, %p130
    %p132 = pneg %p131
    // Predicated region
    $region25: #{tpu_custom_call.1} parent=5 // pred_check
      _
    $region26: #{tpu_custom_call.1} parent=5 // pred_check_branch
      %134 = sbr.rel (%p131) target = $region28
    $region27: #{tpu_custom_call.1} parent=5 // pred_region
      %s135 = ssub.s32 %s8, 1
      %p136 = pneg %p41
      %p137 = pneg %p38
      %p138 = scmp.lt.s32.totalorder %s17, 1
      %s139 = scalar_select %p138, %s17, 1
      %p140 = scmp.lt.s32.totalorder %s18, 0
      %s141 = scalar_select %p140, %s18, 0
      %s142 = sadd.s32 %s141, %s139
      %s143 = smul.addr %s142, 4
      %s144 = scalar_lea.vmem %s1, %s143
      %p145 = pneg %p69
      %p146 = pneg %p66
      %p147 = pneg %p97
      %p148 = pneg %p94
      %p149 = scmp.lt.s32.totalorder %s17, 1
      %s150 = scalar_select %p149, %s17, 1
      %p151 = scmp.lt.s32.totalorder %s18, 0
      %s152 = scalar_select %p151, %s18, 0
      %s153 = smul.addr %s150, 8
      %s154 = sadd.s32 %s152, %s153
      %s155 = smul.addr %s154, 8
      %s156 = scalar_lea.vmem %s2, %s155
      %p157 = scmp.lt.s32.totalorder %s17, 1
      %s158 = scalar_select %p157, %s17, 1
      %p159 = scmp.lt.s32.totalorder %s18, 0
      %s160 = scalar_select %p159, %s18, 0
      %s161 = sadd.s32 %s160, %s158
      %s162 = smul.addr %s161, 4
      %s163 = scalar_lea.vmem %s1, %s162
      %p164 = scmp.lt.s32.totalorder %s17, 1
      %s165 = scalar_select %p164, %s17, 1
      %p166 = scmp.lt.s32.totalorder %s18, 0
      %s167 = scalar_select %p166, %s18, 0
      %s168 = smul.addr %s165, 8
      %s169 = sadd.s32 %s167, %s168
      %s170 = smul.addr %s169, 8
      %s171 = scalar_lea.vmem %s2, %s170
      %v172 = vld [vmem:[%s0] sm:$0xff]
      %v173 = vld [vmem:[%s0 + $0x8] sm:$0xff]
      %v174 = vld [vmem:[%s0 + $0x10] sm:$0xff]
      %v175 = vld [vmem:[%s0 + $0x18] sm:$0xff]
      %v176 = vld [vmem:[%s0 + $0x20] sm:$0xff]
      %v177 = vld [vmem:[%s0 + $0x28] sm:$0xff]
      %v178 = vld [vmem:[%s0 + $0x30] sm:$0xff]
      %v179 = vld [vmem:[%s0 + $0x38] sm:$0xff]
      %v180 = vld [vmem:[%s163] sm:$0x7]
      %vm181 = vcmask 23552
      %v183 = vsel %vm181, %v172, 0
      %v186 = vsel %vm181, %v173, 0
      %v189 = vsel %vm181, %v174, 0
      %v192 = vsel %vm181, %v175, 0
      %v195 = vsel %vm181, %v176, 0
      %v198 = vsel %vm181, %v177, 0
      %v201 = vsel %vm181, %v178, 0
      %v204 = vsel %vm181, %v179, 0
      %vm206 = vcmask 1042432
      %v208 = vsel %vm206, %v180, 0
      %210 = vmatpush.msra.mxu0 0.0
      %211 = vmatpush.msra.mxu0 0.0
      %212 = vmatpush.msra.mxu0 0.0
      %213 = vmatpush.msra.mxu0 0.0
      %214 = vmatpush.msra.mxu0 0.0
      %215 = vmatpush.msra.mxu0 0.0
      %216 = vmatpush.msra.mxu0 0.0
      %217 = vmatpush.msra.mxu0 0.0
      %218 = vmatpush.msra.mxu0 0.0
      %219 = vmatpush.msra.mxu0 0.0
      %220 = vmatpush.msra.mxu0 0.0
      %221 = vmatpush.msra.mxu0 0.0
      %222 = vmatpush.msra.mxu0 0.0
      %223 = vmatpush.msra.mxu0 0.0
      %224 = vmatpush.msra.mxu0 0.0
      %225 = vmatpush.msra.mxu0 %v208
      %226 = vmatmul.f32.gmra.mxu0 %v183
      %v227 = vpop.f32.mrf.mxu0
      %v228 = vadd.f32 0.0, %v227
      %229 = vmatmul.f32.gmra.mxu0 %v186
      %v230 = vpop.f32.mrf.mxu0
      %v231 = vadd.f32 0.0, %v230
      %232 = vmatmul.f32.gmra.mxu0 %v189
      %v233 = vpop.f32.mrf.mxu0
      %v234 = vadd.f32 0.0, %v233
      %235 = vmatmul.f32.gmra.mxu0 %v192
      %v236 = vpop.f32.mrf.mxu0
      %v237 = vadd.f32 0.0, %v236
      %238 = vmatmul.f32.gmra.mxu0 %v195
      %v239 = vpop.f32.mrf.mxu0
      %v240 = vadd.f32 0.0, %v239
      %241 = vmatmul.f32.gmra.mxu0 %v198
      %v242 = vpop.f32.mrf.mxu0
      %v243 = vadd.f32 0.0, %v242
      %244 = vmatmul.f32.gmra.mxu0 %v201
      %v245 = vpop.f32.mrf.mxu0
      %v246 = vadd.f32 0.0, %v245
      %247 = vmatmul.f32.gmra.mxu0 %v204
      %v248 = vpop.f32.mrf.mxu0
      %v249 = vadd.f32 0.0, %v248
      %250 = vdwg.mxu0
      %vm251 = vcmask 130048
      %252 = vst.msk [vmem:[%s171] sm:$0xff] %vm251, %v228
      %253 = vst.msk [vmem:[%s171 + $0x8] sm:$0xff] %vm251, %v231
      %254 = vst.msk [vmem:[%s171 + $0x10] sm:$0xff] %vm251, %v234
      %255 = vst.msk [vmem:[%s171 + $0x18] sm:$0xff] %vm251, %v237
      %256 = vst.msk [vmem:[%s171 + $0x20] sm:$0xff] %vm251, %v240
      %257 = vst.msk [vmem:[%s171 + $0x28] sm:$0xff] %vm251, %v243
      %258 = vst.msk [vmem:[%s171 + $0x30] sm:$0xff] %vm251, %v246
      %259 = vst.msk [vmem:[%s171 + $0x38] sm:$0xff] %vm251, %v249
      %p260 = scmp.lt.s32.totalorder %s17, 1
      %s261 = scalar_select %p260, %s17, 1
      %p262 = scmp.lt.s32.totalorder %s18, 0
      %s263 = scalar_select %p262, %s18, 0
      %s264 = smul.addr %s261, 8
      %s265 = sadd.s32 %s263, %s264
      %s266 = smul.addr %s265, 8
      %s267 = scalar_lea.vmem %s2, %s266
      // Predicated region
      $region29: #{tpu_custom_call.1} parent=27 // pred_check
        %p268 = pneg %p94
      $region30: #{tpu_custom_call.1} parent=27 // pred_check_branch
        %270 = sbr.rel (%p268) target = $region32
      $region31: #{tpu_custom_call.1} parent=27 // pred_region
        _
      $region32: #{tpu_custom_call.1} parent=27 // pred_fallthru
        _
    $region28: #{tpu_custom_call.1} parent=5 // pred_fallthru
      _
    %p271 = scmp.le.s32.totalorder 2, %s8
    // Predicated region
    $region33: #{tpu_custom_call.1} parent=5 // pred_check
      %p272 = pneg %p271
    $region34: #{tpu_custom_call.1} parent=5 // pred_check_branch
      %274 = sbr.rel (%p272) target = $region36
    $region35: #{tpu_custom_call.1} parent=5 // pred_region
      %s275 = ssub.s32 %s8, 2
      // Predicated region
      $region37: #{tpu_custom_call.1} parent=35 // pred_check
        %p276 = pneg %p100
      $region38: #{tpu_custom_call.1} parent=35 // pred_check_branch
        %278 = sbr.rel (%p276) target = $region40
      $region39: #{tpu_custom_call.1} parent=35 // pred_region
        %p279 = scmp.lt.s32.totalorder %s19, 1
        %s280 = scalar_select %p279, %s19, 1
        %p281 = scmp.lt.s32.totalorder %s20, 0
        %s282 = scalar_select %p281, %s20, 0
        %s283 = smul.addr %s280, 8
        %s284 = sadd.s32 %s282, %s283
        %s285 = smul.addr %s284, 8
        %s286 = scalar_lea.vmem %s2, %s285
      $region40: #{tpu_custom_call.1} parent=35 // pred_fallthru
        _
    $region36: #{tpu_custom_call.1} parent=5 // pred_fallthru
      _
  $region6: #{tpu_custom_call.1} parent=0 // loop_footer
    %s12 = sadd.s32 1, %s8
  $region7: #{tpu_custom_call.1} parent=0 // loop_footer_branch
    %7 = sbr.rel target = $region3
  $region8: #{tpu_custom_call.1} parent=0 // loop_exit
    _

</llo_original>
